<compile_context>
chip_gen: v5e
topology: v5e:2x2
jax: 0.10.0
libtpu: 0.0.40
codegen_flags: <defaults>
</compile_context>

<pallas_src>
import functools

import jax
import jax.numpy as jnp
from jax.experimental import pallas as pl
from jax.experimental.pallas import tpu as pltpu


# ----------------------------- config ---------------------------------------
class Config:
    hidden_size = 32
    encoder_hidden_size = 48
    num_attention_heads = 4
    num_key_value_heads = 2
    head_dim = 8                 # num_attention_heads * head_dim == hidden_size
    attention_bias = True
    attention_dropout = 0.0      # eval mode -> dropout is a no-op
    rope_theta = 10000.0


# ------------------------- fused Pallas kernel -------------------------------
def _fused_cross_attn_kernel(h_ref, e_ref, qw_ref, qb_ref, kvw_ref, kvb_ref,
                             ow_ref, ob_ref, o_ref, *,
                             num_heads, num_kv_heads, head_dim):
    # h_ref : (Bt, q_len, hidden)          e_ref : (Bt, v_len, enc_hidden)
    # qw_ref: (hidden, H*d)  (scale folded)       qb_ref: (1, H*d)
    # kvw_ref: (enc_hidden, 2*Hkv*d)              kvb_ref: (1, 2*Hkv*d)
    # ow_ref: (H*d, hidden)                       ob_ref: (1, hidden)
    # o_ref : (Bt, q_len, hidden)
    Bt, q_len, hidden_in = h_ref.shape
    _, v_len, enc_hidden = e_ref.shape
    d = head_dim
    groups = num_heads // num_kv_heads
    kv_width = num_kv_heads * d
    hidden_out = ow_ref.shape[1]

    # ---- hoisted weight / bias loads (once per grid step) -------------------
    qw = qw_ref[...]
    kvw = kvw_ref[...]
    ow = ow_ref[...]
    qb = qb_ref[...].astype(jnp.float32)
    kvb = kvb_ref[...].astype(jnp.float32)
    ob = ob_ref[...].astype(jnp.float32)

    # ---- projections on the whole batch tile ---------------------------------
    # Collapse (Bt, seq) -> rows: last dim unchanged and q_len / v_len are
    # multiples of 8, so this is a sublane-only reshape (no relayout).
    x = h_ref[...].reshape(Bt * q_len, hidden_in)
    enc = e_ref[...].reshape(Bt * v_len, enc_hidden)

    # MXU consumes operands in their stored dtype; accumulate + bias in f32.
    q2d = jnp.dot(x, qw, preferred_element_type=jnp.float32) + qb        # (Bt*q_len, H*d)
    kv2d = jnp.dot(enc, kvw, preferred_element_type=jnp.float32) + kvb   # (Bt*v_len, 2*Hkv*d)

    q3 = q2d.reshape(Bt, q_len, num_heads * d)
    kv3 = kv2d.reshape(Bt, v_len, 2 * kv_width)

    # ---- GQA SDPA, batched over the batch tile via dot_general batch dims ----
    head_outs = []
    for kvh in range(num_kv_heads):
        # K / V for this kv head sliced ONCE and shared by all `groups` q heads.
        k_h = kv3[:, :, kvh * d:(kvh + 1) * d]                           # (Bt, v_len, d)
        v_h = kv3[:, :, kv_width + kvh * d:kv_width + (kvh + 1) * d]     # (Bt, v_len, d)
        for g in range(groups):
            h = kvh * groups + g
            q_h = q3[:, :, h * d:(h + 1) * d]                            # (Bt, q_len, d)
            s = jnp.einsum('bqd,bkd->bqk', q_h, k_h,
                           preferred_element_type=jnp.float32)           # (Bt, q_len, v_len)
            m = jnp.max(s, axis=-1, keepdims=True)
            p = jnp.exp(s - m)
            l = jnp.sum(p, axis=-1, keepdims=True)
            o_h = jnp.einsum('bqk,bkd->bqd', p.astype(v_h.dtype), v_h,
                             preferred_element_type=jnp.float32)         # (Bt, q_len, d)
            head_outs.append(o_h / l)     # exact divide (matches SDPA softmax)

    # Assemble the attention slab once -> single fused o-proj matmul.
    attn = jnp.concatenate(head_outs, axis=-1)                           # (Bt, q_len, H*d)
    attn2 = attn.reshape(Bt * q_len, num_heads * d).astype(ow.dtype)
    out = jnp.dot(attn2, ow, preferred_element_type=jnp.float32) + ob    # (Bt*q_len, hidden)

    # NOTE: hidden=32 < 128 lanes => inherently lane-sparse store; the only
    # real mitigation is fusing with the consumer layer (out of scope here).
    o_ref[...] = out.reshape(Bt, q_len, hidden_out).astype(o_ref.dtype)


# ------------------------ param prep & forward wrapper ------------------------
def init_params(cfg, key, dtype=jnp.float32):
    ks = jax.random.split(key, 8)
    qkv_out = cfg.num_attention_heads * cfg.head_dim
    kv_out = cfg.num_key_value_heads * cfg.head_dim

    def lin(kw, kb, in_dim, out_dim):
        w = jax.random.normal(kw, (in_dim, out_dim), dtype) * 0.02
        b = jax.random.normal(kb, (out_dim,), dtype) * 0.02
        return w, b

    params = {}
    params["q_w"], params["q_b"] = lin(ks[0], ks[1], cfg.hidden_size, qkv_out)
    params["k_w"], params["k_b"] = lin(ks[2], ks[3], cfg.encoder_hidden_size, kv_out)
    params["v_w"], params["v_b"] = lin(ks[4], ks[5], cfg.encoder_hidden_size, kv_out)
    params["o_w"], params["o_b"] = lin(ks[6], ks[7], qkv_out, cfg.hidden_size)
    return params


def prepare_fused_params(params, cfg):
    """One-time prep: fold softmax scale into q_w/q_b, concat k/v weights."""
    scale = cfg.head_dim ** -0.5
    return {
        "q_w": params["q_w"] * scale,
        "q_b": (params["q_b"] * scale).reshape(1, -1),
        "kv_w": jnp.concatenate([params["k_w"], params["v_w"]], axis=1),
        "kv_b": jnp.concatenate([params["k_b"], params["v_b"]]).reshape(1, -1),
        "o_w": params["o_w"],
        "o_b": params["o_b"].reshape(1, -1),
    }


def cross_attention_forward(fused, hidden_states, encoder_hidden_states, cfg,
                            *, max_grid_steps=2):
    B, q_len, hidden = hidden_states.shape
    _, v_len, enc_hidden = encoder_hidden_states.shape
    H, H_kv, d = cfg.num_attention_heads, cfg.num_key_value_heads, cfg.head_dim
    qkv_out = H * d
    kv_out = H_kv * d

    # Fold the batch into the block.  Keep up to `max_grid_steps` (=2) grid
    # steps so both v7x TensorCores get work; on 1-TC chips (v5e/v6e) the one
    # extra per-step overhead is negligible versus the B-1 steps saved.
    steps = max(1, min(max_grid_steps, B))
    Bt = pl.cdiv(B, steps)
    steps = pl.cdiv(B, Bt)        # actual number of batch tiles

    kernel = functools.partial(
        _fused_cross_attn_kernel,
        num_heads=H, num_kv_heads=H_kv, head_dim=d)

    # advisory cost estimate for XLA scheduling
    flops = 2 * B * (q_len * hidden * qkv_out
                     + v_len * enc_hidden * 2 * kv_out
                     + 2 * H * q_len * v_len * d
                     + q_len * qkv_out * hidden)
    itemsize = jnp.dtype(hidden_states.dtype).itemsize
    bytes_accessed = itemsize * (
        hidden_states.size + encoder_hidden_states.size
        + fused["q_w"].size + fused["q_b"].size
        + fused["kv_w"].size + fused["kv_b"].size
        + fused["o_w"].size + fused["o_b"].size
        + B * q_len * hidden)
    cost = pl.CostEstimate(flops=flops,
                           transcendentals=B * H * q_len * v_len,
                           bytes_accessed=bytes_accessed)

    # Weight/bias BlockSpecs use constant index_maps, so Pallas keeps those
    # blocks resident in VMEM across grid steps (no per-step re-DMA).
    return pl.pallas_call(
        kernel,
        out_shape=jax.ShapeDtypeStruct((B, q_len, hidden), hidden_states.dtype),
        grid=(steps,),
        in_specs=[
            pl.BlockSpec((Bt, q_len, hidden), lambda i: (i, 0, 0)),
            pl.BlockSpec((Bt, v_len, enc_hidden), lambda i: (i, 0, 0)),
            pl.BlockSpec((hidden, qkv_out), lambda i: (0, 0)),
            pl.BlockSpec((1, qkv_out), lambda i: (0, 0)),
            pl.BlockSpec((enc_hidden, 2 * kv_out), lambda i: (0, 0)),
            pl.BlockSpec((1, 2 * kv_out), lambda i: (0, 0)),
            pl.BlockSpec((qkv_out, hidden), lambda i: (0, 0)),
            pl.BlockSpec((1, hidden), lambda i: (0, 0)),
        ],
        out_specs=pl.BlockSpec((Bt, q_len, hidden), lambda i: (i, 0, 0)),
        compiler_params=pltpu.CompilerParams(
            dimension_semantics=("parallel",)),   # v7x: batch tiles split across 2 TCs
        cost_estimate=cost,
    )(hidden_states, encoder_hidden_states,
      fused["q_w"], fused["q_b"], fused["kv_w"], fused["kv_b"],
      fused["o_w"], fused["o_b"])


# ------------------------------ reference ------------------------------------
def reference_forward(params, hidden_states, encoder_hidden_states, cfg):
    B, q_len, _ = hidden_states.shape
    _, v_len, _ = encoder_hidden_states.shape
    H, H_kv, d = cfg.num_attention_heads, cfg.num_key_value_heads, cfg.head_dim
    groups = H // H_kv

    q = hidden_states @ params["q_w"] + params["q_b"]
    k = encoder_hidden_states @ params["k_w"] + params["k_b"]
    v = encoder_hidden_states @ params["v_w"] + params["v_b"]
    q = q.reshape(B, q_len, H, d).transpose(0, 2, 1, 3)
    k = k.reshape(B, v_len, H_kv, d).transpose(0, 2, 1, 3)
    v = v.reshape(B, v_len, H_kv, d).transpose(0, 2, 1, 3)
    k = jnp.repeat(k, groups, axis=1)          # repeat_kv
    v = jnp.repeat(v, groups, axis=1)
    s = jnp.einsum("bhqd,bhkd->bhqk", q, k) * (d ** -0.5)
    p = jax.nn.softmax(s, axis=-1)
    o = jnp.einsum("bhqk,bhkd->bhqd", p, v)
    o = o.transpose(0, 2, 1, 3).reshape(B, q_len, H * d)
    return o @ params["o_w"] + params["o_b"]


# --------------------------------- main --------------------------------------
if __name__ == "__main__":
    cfg = Config()
    key = jax.random.PRNGKey(0)
    k_param, k_h, k_e = jax.random.split(key, 3)

    B, q_len, v_len = 4, 8, 16
    hidden_states = jax.random.normal(k_h, (B, q_len, cfg.hidden_size), jnp.float32)
    encoder_hidden_states = jax.random.normal(
        k_e, (B, v_len, cfg.encoder_hidden_size), jnp.float32)

    params = init_params(cfg, k_param)
    fused = prepare_fused_params(params, cfg)

    out = cross_attention_forward(fused, hidden_states, encoder_hidden_states, cfg)
    out = jax.block_until_ready(out)

    ref = reference_forward(params, hidden_states, encoder_hidden_states, cfg)
    assert out.shape == (B, q_len, cfg.hidden_size)
    assert jnp.allclose(out, ref, atol=1e-3, rtol=1e-3), "mismatch vs reference"

    print("KERNEL_OK")
</pallas_src>

<mosaic_0001>
module attributes {stable_mosaic.version = 11 : i64} {
  func.func @_fused_cross_attn_kernel(%arg0: i32, %arg1: memref<2x8x32xf32, #tpu.memory_space<vmem>>, %arg2: memref<2x16x48xf32, #tpu.memory_space<vmem>>, %arg3: memref<32x32xf32, #tpu.memory_space<vmem>>, %arg4: memref<1x32xf32, #tpu.memory_space<vmem>>, %arg5: memref<48x32xf32, #tpu.memory_space<vmem>>, %arg6: memref<1x32xf32, #tpu.memory_space<vmem>>, %arg7: memref<32x32xf32, #tpu.memory_space<vmem>>, %arg8: memref<1x32xf32, #tpu.memory_space<vmem>>, %arg9: memref<2x8x32xf32, #tpu.memory_space<vmem>>) attributes {dimension_semantics = [#tpu.dimension_semantics<parallel>], iteration_bounds = array<i64: 2>, scalar_prefetch = 0 : i64, scratch_operands = 0 : i64, tpu.core_type = #tpu.core_type<tc>, window_params = [{transform_indices = @transform_0, window_bounds = array<i64: 2, 8, 32>}, {transform_indices = @transform_1, window_bounds = array<i64: 2, 16, 48>}, {pipeline_mode = #tpu.pipeline_mode<synchronous>, transform_indices = @transform_2, window_bounds = array<i64: 32, 32>}, {pipeline_mode = #tpu.pipeline_mode<synchronous>, transform_indices = @transform_3, window_bounds = array<i64: 1, 32>}, {pipeline_mode = #tpu.pipeline_mode<synchronous>, transform_indices = @transform_4, window_bounds = array<i64: 48, 32>}, {pipeline_mode = #tpu.pipeline_mode<synchronous>, transform_indices = @transform_5, window_bounds = array<i64: 1, 32>}, {pipeline_mode = #tpu.pipeline_mode<synchronous>, transform_indices = @transform_6, window_bounds = array<i64: 32, 32>}, {pipeline_mode = #tpu.pipeline_mode<synchronous>, transform_indices = @transform_7, window_bounds = array<i64: 1, 32>}, {transform_indices = @transform_8, window_bounds = array<i64: 2, 8, 32>}]} {
    %c0 = arith.constant 0 : index
    %c0_0 = arith.constant 0 : index
    %0 = vector.load %arg3[%c0, %c0_0] : memref<32x32xf32, #tpu.memory_space<vmem>>, vector<32x32xf32>
    %c0_1 = arith.constant 0 : index
    %c0_2 = arith.constant 0 : index
    %1 = vector.load %arg5[%c0_1, %c0_2] : memref<48x32xf32, #tpu.memory_space<vmem>>, vector<48x32xf32>
    %c0_3 = arith.constant 0 : index
    %c0_4 = arith.constant 0 : index
    %2 = vector.load %arg7[%c0_3, %c0_4] : memref<32x32xf32, #tpu.memory_space<vmem>>, vector<32x32xf32>
    %c0_5 = arith.constant 0 : index
    %c0_6 = arith.constant 0 : index
    %3 = vector.load %arg4[%c0_5, %c0_6] : memref<1x32xf32, #tpu.memory_space<vmem>>, vector<1x32xf32>
    %c0_7 = arith.constant 0 : index
    %c0_8 = arith.constant 0 : index
    %4 = vector.load %arg6[%c0_7, %c0_8] : memref<1x32xf32, #tpu.memory_space<vmem>>, vector<1x32xf32>
    %c0_9 = arith.constant 0 : index
    %c0_10 = arith.constant 0 : index
    %5 = vector.load %arg8[%c0_9, %c0_10] : memref<1x32xf32, #tpu.memory_space<vmem>>, vector<1x32xf32>
    %c0_11 = arith.constant 0 : index
    %c0_12 = arith.constant 0 : index
    %c0_13 = arith.constant 0 : index
    %6 = vector.load %arg1[%c0_11, %c0_12, %c0_13] : memref<2x8x32xf32, #tpu.memory_space<vmem>>, vector<2x8x32xf32>
    %7 = vector.shape_cast %6 : vector<2x8x32xf32> to vector<16x32xf32>
    %c0_14 = arith.constant 0 : index
    %c0_15 = arith.constant 0 : index
    %c0_16 = arith.constant 0 : index
    %8 = vector.load %arg2[%c0_14, %c0_15, %c0_16] : memref<2x16x48xf32, #tpu.memory_space<vmem>>, vector<2x16x48xf32>
    %9 = vector.shape_cast %8 : vector<2x16x48xf32> to vector<32x48xf32>
    %cst = arith.constant dense<0.000000e+00> : vector<16x32xf32>
    %10 = tpu.matmul %7, %0, %cst {dimension_numbers = #tpu.dot_dimension_numbers<[1], [0], [0], [1], [0, 0, 1, 1], [], []>} : vector<16x32xf32>, vector<32x32xf32>, vector<16x32xf32> -> vector<16x32xf32>
    %11 = vector.broadcast %3 : vector<1x32xf32> to vector<16x32xf32>
    %12 = arith.addf %10, %11 : vector<16x32xf32>
    %cst_17 = arith.constant dense<0.000000e+00> : vector<32x32xf32>
    %13 = tpu.matmul %9, %1, %cst_17 {dimension_numbers = #tpu.dot_dimension_numbers<[1], [0], [0], [1], [0, 0, 1, 1], [], []>} : vector<32x48xf32>, vector<48x32xf32>, vector<32x32xf32> -> vector<32x32xf32>
    %14 = vector.broadcast %4 : vector<1x32xf32> to vector<32x32xf32>
    %15 = arith.addf %13, %14 : vector<32x32xf32>
    %16 = vector.shape_cast %12 : vector<16x32xf32> to vector<2x8x32xf32>
    %17 = vector.shape_cast %15 : vector<32x32xf32> to vector<2x16x32xf32>
    %18 = vector.extract_strided_slice %17 {offsets = [0, 0, 0], sizes = [2, 16, 8], strides = [1, 1, 1]} : vector<2x16x32xf32> to vector<2x16x8xf32>
    %19 = vector.extract_strided_slice %17 {offsets = [0, 0, 16], sizes = [2, 16, 8], strides = [1, 1, 1]} : vector<2x16x32xf32> to vector<2x16x8xf32>
    %20 = vector.extract_strided_slice %16 {offsets = [0, 0, 0], sizes = [2, 8, 8], strides = [1, 1, 1]} : vector<2x8x32xf32> to vector<2x8x8xf32>
    "tpu.trace_start"() <{level = 10 : i32, message = "bqd,bkd->bqk"}> : () -> ()
    %cst_18 = arith.constant dense<0.000000e+00> : vector<2x8x16xf32>
    %21 = tpu.matmul %20, %18, %cst_18 {dimension_numbers = #tpu.dot_dimension_numbers<[2], [2], [1], [1], [0, 0, 0, 1, 1, 1], [0], [0]>} : vector<2x8x8xf32>, vector<2x16x8xf32>, vector<2x8x16xf32> -> vector<2x8x16xf32>
    "tpu.trace_stop"() : () -> ()
    %cst_19 = arith.constant dense<0xFF800000> : vector<2x8xf32>
    %22 = vector.multi_reduction <maximumf>, %21, %cst_19 [2] : vector<2x8x16xf32> to vector<2x8xf32>
    %23 = vector.shape_cast %22 : vector<2x8xf32> to vector<2x8x1xf32>
    %24 = vector.broadcast %23 : vector<2x8x1xf32> to vector<2x8x16xf32>
    %25 = arith.subf %21, %24 : vector<2x8x16xf32>
    %26 = math.exp %25 : vector<2x8x16xf32>
    %cst_20 = arith.constant dense<0.000000e+00> : vector<2x8xf32>
    %27 = vector.multi_reduction <add>, %26, %cst_20 [2] : vector<2x8x16xf32> to vector<2x8xf32>
    %28 = vector.shape_cast %27 : vector<2x8xf32> to vector<2x8x1xf32>
    "tpu.trace_start"() <{level = 10 : i32, message = "bqk,bkd->bqd"}> : () -> ()
    %cst_21 = arith.constant dense<0.000000e+00> : vector<2x8x8xf32>
    %29 = tpu.matmul %26, %19, %cst_21 {dimension_numbers = #tpu.dot_dimension_numbers<[2], [1], [1], [2], [0, 0, 0, 1, 1, 2], [0], [0]>} : vector<2x8x16xf32>, vector<2x16x8xf32>, vector<2x8x8xf32> -> vector<2x8x8xf32>
    "tpu.trace_stop"() : () -> ()
    %30 = vector.broadcast %28 : vector<2x8x1xf32> to vector<2x8x8xf32>
    %31 = arith.divf %29, %30 : vector<2x8x8xf32>
    %32 = vector.extract_strided_slice %16 {offsets = [0, 0, 8], sizes = [2, 8, 8], strides = [1, 1, 1]} : vector<2x8x32xf32> to vector<2x8x8xf32>
    "tpu.trace_start"() <{level = 10 : i32, message = "bqd,bkd->bqk"}> : () -> ()
    %cst_22 = arith.constant dense<0.000000e+00> : vector<2x8x16xf32>
    %33 = tpu.matmul %32, %18, %cst_22 {dimension_numbers = #tpu.dot_dimension_numbers<[2], [2], [1], [1], [0, 0, 0, 1, 1, 1], [0], [0]>} : vector<2x8x8xf32>, vector<2x16x8xf32>, vector<2x8x16xf32> -> vector<2x8x16xf32>
    "tpu.trace_stop"() : () -> ()
    %cst_23 = arith.constant dense<0xFF800000> : vector<2x8xf32>
    %34 = vector.multi_reduction <maximumf>, %33, %cst_23 [2] : vector<2x8x16xf32> to vector<2x8xf32>
    %35 = vector.shape_cast %34 : vector<2x8xf32> to vector<2x8x1xf32>
    %36 = vector.broadcast %35 : vector<2x8x1xf32> to vector<2x8x16xf32>
    %37 = arith.subf %33, %36 : vector<2x8x16xf32>
    %38 = math.exp %37 : vector<2x8x16xf32>
    %cst_24 = arith.constant dense<0.000000e+00> : vector<2x8xf32>
    %39 = vector.multi_reduction <add>, %38, %cst_24 [2] : vector<2x8x16xf32> to vector<2x8xf32>
    %40 = vector.shape_cast %39 : vector<2x8xf32> to vector<2x8x1xf32>
    "tpu.trace_start"() <{level = 10 : i32, message = "bqk,bkd->bqd"}> : () -> ()
    %cst_25 = arith.constant dense<0.000000e+00> : vector<2x8x8xf32>
    %41 = tpu.matmul %38, %19, %cst_25 {dimension_numbers = #tpu.dot_dimension_numbers<[2], [1], [1], [2], [0, 0, 0, 1, 1, 2], [0], [0]>} : vector<2x8x16xf32>, vector<2x16x8xf32>, vector<2x8x8xf32> -> vector<2x8x8xf32>
    "tpu.trace_stop"() : () -> ()
    %42 = vector.broadcast %40 : vector<2x8x1xf32> to vector<2x8x8xf32>
    %43 = arith.divf %41, %42 : vector<2x8x8xf32>
    %44 = vector.extract_strided_slice %17 {offsets = [0, 0, 8], sizes = [2, 16, 8], strides = [1, 1, 1]} : vector<2x16x32xf32> to vector<2x16x8xf32>
    %45 = vector.extract_strided_slice %17 {offsets = [0, 0, 24], sizes = [2, 16, 8], strides = [1, 1, 1]} : vector<2x16x32xf32> to vector<2x16x8xf32>
    %46 = vector.extract_strided_slice %16 {offsets = [0, 0, 16], sizes = [2, 8, 8], strides = [1, 1, 1]} : vector<2x8x32xf32> to vector<2x8x8xf32>
    "tpu.trace_start"() <{level = 10 : i32, message = "bqd,bkd->bqk"}> : () -> ()
    %cst_26 = arith.constant dense<0.000000e+00> : vector<2x8x16xf32>
    %47 = tpu.matmul %46, %44, %cst_26 {dimension_numbers = #tpu.dot_dimension_numbers<[2], [2], [1], [1], [0, 0, 0, 1, 1, 1], [0], [0]>} : vector<2x8x8xf32>, vector<2x16x8xf32>, vector<2x8x16xf32> -> vector<2x8x16xf32>
    "tpu.trace_stop"() : () -> ()
    %cst_27 = arith.constant dense<0xFF800000> : vector<2x8xf32>
    %48 = vector.multi_reduction <maximumf>, %47, %cst_27 [2] : vector<2x8x16xf32> to vector<2x8xf32>
    %49 = vector.shape_cast %48 : vector<2x8xf32> to vector<2x8x1xf32>
    %50 = vector.broadcast %49 : vector<2x8x1xf32> to vector<2x8x16xf32>
    %51 = arith.subf %47, %50 : vector<2x8x16xf32>
    %52 = math.exp %51 : vector<2x8x16xf32>
    %cst_28 = arith.constant dense<0.000000e+00> : vector<2x8xf32>
    %53 = vector.multi_reduction <add>, %52, %cst_28 [2] : vector<2x8x16xf32> to vector<2x8xf32>
    %54 = vector.shape_cast %53 : vector<2x8xf32> to vector<2x8x1xf32>
    "tpu.trace_start"() <{level = 10 : i32, message = "bqk,bkd->bqd"}> : () -> ()
    %cst_29 = arith.constant dense<0.000000e+00> : vector<2x8x8xf32>
    %55 = tpu.matmul %52, %45, %cst_29 {dimension_numbers = #tpu.dot_dimension_numbers<[2], [1], [1], [2], [0, 0, 0, 1, 1, 2], [0], [0]>} : vector<2x8x16xf32>, vector<2x16x8xf32>, vector<2x8x8xf32> -> vector<2x8x8xf32>
    "tpu.trace_stop"() : () -> ()
    %56 = vector.broadcast %54 : vector<2x8x1xf32> to vector<2x8x8xf32>
    %57 = arith.divf %55, %56 : vector<2x8x8xf32>
    %58 = vector.extract_strided_slice %16 {offsets = [0, 0, 24], sizes = [2, 8, 8], strides = [1, 1, 1]} : vector<2x8x32xf32> to vector<2x8x8xf32>
    "tpu.trace_start"() <{level = 10 : i32, message = "bqd,bkd->bqk"}> : () -> ()
    %cst_30 = arith.constant dense<0.000000e+00> : vector<2x8x16xf32>
    %59 = tpu.matmul %58, %44, %cst_30 {dimension_numbers = #tpu.dot_dimension_numbers<[2], [2], [1], [1], [0, 0, 0, 1, 1, 1], [0], [0]>} : vector<2x8x8xf32>, vector<2x16x8xf32>, vector<2x8x16xf32> -> vector<2x8x16xf32>
    "tpu.trace_stop"() : () -> ()
    %cst_31 = arith.constant dense<0xFF800000> : vector<2x8xf32>
    %60 = vector.multi_reduction <maximumf>, %59, %cst_31 [2] : vector<2x8x16xf32> to vector<2x8xf32>
    %61 = vector.shape_cast %60 : vector<2x8xf32> to vector<2x8x1xf32>
    %62 = vector.broadcast %61 : vector<2x8x1xf32> to vector<2x8x16xf32>
    %63 = arith.subf %59, %62 : vector<2x8x16xf32>
    %64 = math.exp %63 : vector<2x8x16xf32>
    %cst_32 = arith.constant dense<0.000000e+00> : vector<2x8xf32>
    %65 = vector.multi_reduction <add>, %64, %cst_32 [2] : vector<2x8x16xf32> to vector<2x8xf32>
    %66 = vector.shape_cast %65 : vector<2x8xf32> to vector<2x8x1xf32>
    "tpu.trace_start"() <{level = 10 : i32, message = "bqk,bkd->bqd"}> : () -> ()
    %cst_33 = arith.constant dense<0.000000e+00> : vector<2x8x8xf32>
    %67 = tpu.matmul %64, %45, %cst_33 {dimension_numbers = #tpu.dot_dimension_numbers<[2], [1], [1], [2], [0, 0, 0, 1, 1, 2], [0], [0]>} : vector<2x8x16xf32>, vector<2x16x8xf32>, vector<2x8x8xf32> -> vector<2x8x8xf32>
    "tpu.trace_stop"() : () -> ()
    %68 = vector.broadcast %66 : vector<2x8x1xf32> to vector<2x8x8xf32>
    %69 = arith.divf %67, %68 : vector<2x8x8xf32>
    %70 = tpu.concatenate %31, %43, %57, %69 in 2 : vector<2x8x8xf32>, vector<2x8x8xf32>, vector<2x8x8xf32>, vector<2x8x8xf32> -> vector<2x8x32xf32>
    %71 = vector.shape_cast %70 : vector<2x8x32xf32> to vector<16x32xf32>
    %cst_34 = arith.constant dense<0.000000e+00> : vector<16x32xf32>
    %72 = tpu.matmul %71, %2, %cst_34 {dimension_numbers = #tpu.dot_dimension_numbers<[1], [0], [0], [1], [0, 0, 1, 1], [], []>} : vector<16x32xf32>, vector<32x32xf32>, vector<16x32xf32> -> vector<16x32xf32>
    %73 = vector.broadcast %5 : vector<1x32xf32> to vector<16x32xf32>
    %74 = arith.addf %72, %73 : vector<16x32xf32>
    %75 = vector.shape_cast %74 : vector<16x32xf32> to vector<2x8x32xf32>
    %c0_35 = arith.constant 0 : index
    %c0_36 = arith.constant 0 : index
    %c0_37 = arith.constant 0 : index
    %76 = vector.load %arg9[%c0_35, %c0_36, %c0_37] : memref<2x8x32xf32, #tpu.memory_space<vmem>>, vector<2x8x32xf32>
    tpu.vector_store %arg9[%c0_35, %c0_36, %c0_37], %75 {strides = array<i32>} : memref<2x8x32xf32, #tpu.memory_space<vmem>>, vector<2x8x32xf32>,
    return
  }
  func.func @transform_0(%arg0: i32) -> (i32, i32, i32) {
    %c0_i32 = arith.constant 0 : i32
    %c0_i32_0 = arith.constant 0 : i32
    %c0_i32_1 = arith.constant 0 : i32
    return %arg0, %c0_i32, %c0_i32_0 : i32, i32, i32
  }
  func.func @transform_1(%arg0: i32) -> (i32, i32, i32) {
    %c0_i32 = arith.constant 0 : i32
    %c0_i32_0 = arith.constant 0 : i32
    %c0_i32_1 = arith.constant 0 : i32
    return %arg0, %c0_i32, %c0_i32_0 : i32, i32, i32
  }
  func.func @transform_2(%arg0: i32) -> (i32, i32) {
    %c0_i32 = arith.constant 0 : i32
    %c0_i32_0 = arith.constant 0 : i32
    %c0_i32_1 = arith.constant 0 : i32
    return %c0_i32, %c0_i32_0 : i32, i32
  }
  func.func @transform_3(%arg0: i32) -> (i32, i32) {
    %c0_i32 = arith.constant 0 : i32
    %c0_i32_0 = arith.constant 0 : i32
    %c0_i32_1 = arith.constant 0 : i32
    return %c0_i32, %c0_i32_0 : i32, i32
  }
  func.func @transform_4(%arg0: i32) -> (i32, i32) {
    %c0_i32 = arith.constant 0 : i32
    %c0_i32_0 = arith.constant 0 : i32
    %c0_i32_1 = arith.constant 0 : i32
    return %c0_i32, %c0_i32_0 : i32, i32
  }
  func.func @transform_5(%arg0: i32) -> (i32, i32) {
    %c0_i32 = arith.constant 0 : i32
    %c0_i32_0 = arith.constant 0 : i32
    %c0_i32_1 = arith.constant 0 : i32
    return %c0_i32, %c0_i32_0 : i32, i32
  }
  func.func @transform_6(%arg0: i32) -> (i32, i32) {
    %c0_i32 = arith.constant 0 : i32
    %c0_i32_0 = arith.constant 0 : i32
    %c0_i32_1 = arith.constant 0 : i32
    return %c0_i32, %c0_i32_0 : i32, i32
  }
  func.func @transform_7(%arg0: i32) -> (i32, i32) {
    %c0_i32 = arith.constant 0 : i32
    %c0_i32_0 = arith.constant 0 : i32
    %c0_i32_1 = arith.constant 0 : i32
    return %c0_i32, %c0_i32_0 : i32, i32
  }
  func.func @transform_8(%arg0: i32) -> (i32, i32, i32) {
    %c0_i32 = arith.constant 0 : i32
    %c0_i32_0 = arith.constant 0 : i32
    %c0_i32_1 = arith.constant 0 : i32
    return %arg0, %c0_i32, %c0_i32_0 : i32, i32, i32
  }
}

</mosaic_0001>

<llo_original>
// kernel: tpu_custom_call.1
$region0: #{tpu_custom_call.1}
  #allocation0 [shape = 'u32[]', space=smem, size = 0x4, offset = 0x4, fixed_abs, tag = 'smem constant byte address 0x4 - core index']
  #allocation1 [shape = 'u32[72,128]{1,0:T(1,128)}', space=vmem, size = 0x9000, scoped, tag = 'internal scratch']
  %s0 = inlined_call_operand.hbm [shape: f32[4,8,32], index: 0, kind: input, shape index: {}]
  %s1 = inlined_call_operand.vmem [shape: f32[4,16,48], index: 1, kind: input, shape index: {}]
  %s2 = inlined_call_operand.hbm [shape: f32[32,32], index: 2, kind: input, shape index: {}]
  %s3 = inlined_call_operand.vmem [shape: f32[1,32], index: 3, kind: input, shape index: {}]
  %s4 = inlined_call_operand.vmem [shape: f32[48,32], index: 4, kind: input, shape index: {}]
  %s5 = inlined_call_operand.vmem [shape: f32[1,32], index: 5, kind: input, shape index: {}]
  %s6 = inlined_call_operand.hbm [shape: f32[32,32], index: 6, kind: input, shape index: {}]
  %s7 = inlined_call_operand.vmem [shape: f32[1,32], index: 7, kind: input, shape index: {}]
  %s8 = inlined_call_operand.hbm [shape: f32[4,8,32], index: 8, kind: output, shape index: {}]
  %s9 = sld [smem:[#allocation0]]
  $region77: #{tpu_custom_call.1} parent=0
    _
  %s11 = ssub.s32 1, %s9
  %s12 = scalar_select 0, %s11, %s9
  $region1: #{tpu_custom_call.1} parent=0
    #allocation2 [shape = 'u8[16384]{0}', space=vmem, size = 0x4000, scoped, tag = 'input window, operand 0']
    #allocation3 [shape = 's32[2]{0}', space=sflag, size = 0x8, scoped, tag = 'scoped memory for tpu_custom_call.1']
    #allocation4 [shape = 's32[2]{0}', space=sflag, size = 0x8, scoped, tag = 'scoped memory for tpu_custom_call.1']
    #allocation5 [shape = 'u8[16384]{0}', space=vmem, size = 0x4000, scoped, tag = 'input window, operand 2, single buffered']
    #allocation6 [shape = 's32[1]{0}', space=sflag, size = 0x4, scoped, tag = 'scoped memory for tpu_custom_call.1']
    #allocation7 [shape = 'u8[16384]{0}', space=vmem, size = 0x4000, scoped, tag = 'input window, operand 6, single buffered']
    #allocation8 [shape = 'u8[16384]{0}', space=vmem, size = 0x4000, scoped, tag = 'output window, operand 0']
    %13 = vsyncpa [#allocation3], 0
    %s14 = scalar_lea.sflag [#allocation3], 1
    %15 = vsyncpa %s14, 0
    %16 = vsyncpa [#allocation6], 0
    %17 = vsyncpa [#allocation4], 0
    %s18 = scalar_lea.sflag [#allocation4], 1
    %19 = vsyncpa %s18, 0
    loop: start=0, step=1, limit=4
    $region2: #{tpu_custom_call.1} parent=1 // loop_pre_header
      _
    $region3: #{tpu_custom_call.1} parent=1 // loop_header
      %s21 = sphi 0, %s25
      %p22 = scmp.ge.s32.totalorder %s21, 4
      %s31 = sphi 0, %s33
      %s34 = sphi 0, %s31
      %s35 = sphi 0, %s34
      %s51 = sphi 0, %s35
      %s57 = sphi 0, %s59
      %s60 = sphi 0, %s57
      %s61 = sphi 0, %s60
      %s77 = sphi 0, %s61
      %s81 = sphi 0, %s81
      %s83 = sphi 0, %s81
      %s84 = sphi 0, %s83
      %s98 = sphi 0, %s84
      %s102 = sphi 0, %s102
      %s104 = sphi 0, %s102
      %s105 = sphi 0, %s104
      %s119 = sphi 0, %s105
      %s123 = sphi 0, %s123
      %s125 = sphi 0, %s123
      %s126 = sphi 0, %s125
      %s140 = sphi 0, %s126
      %s144 = sphi 0, %s144
      %s146 = sphi 0, %s144
      %s147 = sphi 0, %s146
      %s161 = sphi 0, %s147
      %s165 = sphi 0, %s165
      %s167 = sphi 0, %s165
      %s168 = sphi 0, %s167
      %s182 = sphi 0, %s168
      %s186 = sphi 0, %s186
      %s188 = sphi 0, %s186
      %s189 = sphi 0, %s188
      %s203 = sphi 0, %s189
      %s209 = sphi 0, %s211
      %s212 = sphi 0, %s209
      %s213 = sphi 0, %s212
      %s229 = sphi 0, %s213
    $region4: #{tpu_custom_call.1} parent=1 // loop_header_branch
      %24 = sbr.rel (%p22) target = $region8
    $region5: #{tpu_custom_call.1} parent=1 // loop_body
      %s26 = ssub.s32 %s21, 1
      %s27 = ssub.s32 %s21, 2
      %s28 = sadd.s32 %s21, 1
      %s29 = ssub.s32 %s21, %s28
      %p30 = scmp.eq.s32.totalorder %s29, 0
      %s32 = sadd.s32 %s31, 1
      %s33 = scalar_select %p30, %s31, %s32
      %p36 = pneg %p30
      %p37 = scmp.eq.s32.totalorder %s21, 1
      %p38 = por %p36, %p37
      %p39 = scmp.ne.s32.totalorder %s31, %s34
      %p40 = scmp.eq.s32.totalorder %s21, 0
      %p41 = por %p39, %p40
      %p42 = scmp.ne.s32.totalorder %s31, %s34
      %p43 = scmp.eq.s32.totalorder %s26, 1
      %p44 = por %p42, %p43
      %p45 = scmp.ne.s32.totalorder %s34, %s35
      %p46 = scmp.eq.s32.totalorder %s26, 0
      %p47 = por %p45, %p46
      %p48 = scmp.ne.s32.totalorder %s34, %s35
      %p49 = scmp.eq.s32.totalorder %s27, 1
      %p50 = por %p48, %p49
      %p52 = scmp.ne.s32.totalorder %s35, %s51
      %p53 = scmp.eq.s32.totalorder %s27, 0
      %p54 = por %p52, %p53
      %s55 = ssub.s32 %s21, %s28
      %p56 = scmp.eq.s32.totalorder %s55, 0
      %s58 = sadd.s32 %s57, 1
      %s59 = scalar_select %p56, %s57, %s58
      %p62 = pneg %p56
      %p63 = scmp.eq.s32.totalorder %s21, 1
      %p64 = por %p62, %p63
      %p65 = scmp.ne.s32.totalorder %s57, %s60
      %p66 = scmp.eq.s32.totalorder %s21, 0
      %p67 = por %p65, %p66
      %p68 = scmp.ne.s32.totalorder %s57, %s60
      %p69 = scmp.eq.s32.totalorder %s26, 1
      %p70 = por %p68, %p69
      %p71 = scmp.ne.s32.totalorder %s60, %s61
      %p72 = scmp.eq.s32.totalorder %s26, 0
      %p73 = por %p71, %p72
      %p74 = scmp.ne.s32.totalorder %s60, %s61
      %p75 = scmp.eq.s32.totalorder %s27, 1
      %p76 = por %p74, %p75
      %p78 = scmp.ne.s32.totalorder %s61, %s77
      %p79 = scmp.eq.s32.totalorder %s27, 0
      %p80 = por %p78, %p79
      %s82 = sadd.s32 %s81, 1
      %p85 = scmp.eq.s32.totalorder %s21, 1
      %p86 = scmp.ne.s32.totalorder %s81, %s83
      %p87 = scmp.eq.s32.totalorder %s21, 0
      %p88 = por %p86, %p87
      %p89 = scmp.ne.s32.totalorder %s81, %s83
      %p90 = scmp.eq.s32.totalorder %s26, 1
      %p91 = por %p89, %p90
      %p92 = scmp.ne.s32.totalorder %s83, %s84
      %p93 = scmp.eq.s32.totalorder %s26, 0
      %p94 = por %p92, %p93
      %p95 = scmp.ne.s32.totalorder %s83, %s84
      %p96 = scmp.eq.s32.totalorder %s27, 1
      %p97 = por %p95, %p96
      %p99 = scmp.ne.s32.totalorder %s84, %s98
      %p100 = scmp.eq.s32.totalorder %s27, 0
      %p101 = por %p99, %p100
      %s103 = sadd.s32 %s102, 1
      %p106 = scmp.eq.s32.totalorder %s21, 1
      %p107 = scmp.ne.s32.totalorder %s102, %s104
      %p108 = scmp.eq.s32.totalorder %s21, 0
      %p109 = por %p107, %p108
      %p110 = scmp.ne.s32.totalorder %s102, %s104
      %p111 = scmp.eq.s32.totalorder %s26, 1
      %p112 = por %p110, %p111
      %p113 = scmp.ne.s32.totalorder %s104, %s105
      %p114 = scmp.eq.s32.totalorder %s26, 0
      %p115 = por %p113, %p114
      %p116 = scmp.ne.s32.totalorder %s104, %s105
      %p117 = scmp.eq.s32.totalorder %s27, 1
      %p118 = por %p116, %p117
      %p120 = scmp.ne.s32.totalorder %s105, %s119
      %p121 = scmp.eq.s32.totalorder %s27, 0
      %p122 = por %p120, %p121
      %s124 = sadd.s32 %s123, 1
      %p127 = scmp.eq.s32.totalorder %s21, 1
      %p128 = scmp.ne.s32.totalorder %s123, %s125
      %p129 = scmp.eq.s32.totalorder %s21, 0
      %p130 = por %p128, %p129
      %p131 = scmp.ne.s32.totalorder %s123, %s125
      %p132 = scmp.eq.s32.totalorder %s26, 1
      %p133 = por %p131, %p132
      %p134 = scmp.ne.s32.totalorder %s125, %s126
      %p135 = scmp.eq.s32.totalorder %s26, 0
      %p136 = por %p134, %p135
      %p137 = scmp.ne.s32.totalorder %s125, %s126
      %p138 = scmp.eq.s32.totalorder %s27, 1
      %p139 = por %p137, %p138
      %p141 = scmp.ne.s32.totalorder %s126, %s140
      %p142 = scmp.eq.s32.totalorder %s27, 0
      %p143 = por %p141, %p142
      %s145 = sadd.s32 %s144, 1
      %p148 = scmp.eq.s32.totalorder %s21, 1
      %p149 = scmp.ne.s32.totalorder %s144, %s146
      %p150 = scmp.eq.s32.totalorder %s21, 0
      %p151 = por %p149, %p150
      %p152 = scmp.ne.s32.totalorder %s144, %s146
      %p153 = scmp.eq.s32.totalorder %s26, 1
      %p154 = por %p152, %p153
      %p155 = scmp.ne.s32.totalorder %s146, %s147
      %p156 = scmp.eq.s32.totalorder %s26, 0
      %p157 = por %p155, %p156
      %p158 = scmp.ne.s32.totalorder %s146, %s147
      %p159 = scmp.eq.s32.totalorder %s27, 1
      %p160 = por %p158, %p159
      %p162 = scmp.ne.s32.totalorder %s147, %s161
      %p163 = scmp.eq.s32.totalorder %s27, 0
      %p164 = por %p162, %p163
      %s166 = sadd.s32 %s165, 1
      %p169 = scmp.eq.s32.totalorder %s21, 1
      %p170 = scmp.ne.s32.totalorder %s165, %s167
      %p171 = scmp.eq.s32.totalorder %s21, 0
      %p172 = por %p170, %p171
      %p173 = scmp.ne.s32.totalorder %s165, %s167
      %p174 = scmp.eq.s32.totalorder %s26, 1
      %p175 = por %p173, %p174
      %p176 = scmp.ne.s32.totalorder %s167, %s168
      %p177 = scmp.eq.s32.totalorder %s26, 0
      %p178 = por %p176, %p177
      %p179 = scmp.ne.s32.totalorder %s167, %s168
      %p180 = scmp.eq.s32.totalorder %s27, 1
      %p181 = por %p179, %p180
      %p183 = scmp.ne.s32.totalorder %s168, %s182
      %p184 = scmp.eq.s32.totalorder %s27, 0
      %p185 = por %p183, %p184
      %s187 = sadd.s32 %s186, 1
      %p190 = scmp.eq.s32.totalorder %s21, 1
      %p191 = scmp.ne.s32.totalorder %s186, %s188
      %p192 = scmp.eq.s32.totalorder %s21, 0
      %p193 = por %p191, %p192
      %p194 = scmp.ne.s32.totalorder %s186, %s188
      %p195 = scmp.eq.s32.totalorder %s26, 1
      %p196 = por %p194, %p195
      %p197 = scmp.ne.s32.totalorder %s188, %s189
      %p198 = scmp.eq.s32.totalorder %s26, 0
      %p199 = por %p197, %p198
      %p200 = scmp.ne.s32.totalorder %s188, %s189
      %p201 = scmp.eq.s32.totalorder %s27, 1
      %p202 = por %p200, %p201
      %p204 = scmp.ne.s32.totalorder %s189, %s203
      %p205 = scmp.eq.s32.totalorder %s27, 0
      %p206 = por %p204, %p205
      %s207 = ssub.s32 %s21, %s28
      %p208 = scmp.eq.s32.totalorder %s207, 0
      %s210 = sadd.s32 %s209, 1
      %s211 = scalar_select %p208, %s209, %s210
      %p214 = pneg %p208
      %p215 = scmp.eq.s32.totalorder %s21, 1
      %p216 = por %p214, %p215
      %p217 = scmp.ne.s32.totalorder %s209, %s212
      %p218 = scmp.eq.s32.totalorder %s21, 0
      %p219 = por %p217, %p218
      %p220 = scmp.ne.s32.totalorder %s209, %s212
      %p221 = scmp.eq.s32.totalorder %s26, 1
      %p222 = por %p220, %p221
      %p223 = scmp.ne.s32.totalorder %s212, %s213
      %p224 = scmp.eq.s32.totalorder %s26, 0
      %p225 = por %p223, %p224
      %p226 = scmp.ne.s32.totalorder %s212, %s213
      %p227 = scmp.eq.s32.totalorder %s27, 1
      %p228 = por %p226, %p227
      %p230 = scmp.ne.s32.totalorder %s213, %s229
      %p231 = scmp.eq.s32.totalorder %s27, 0
      %p232 = por %p230, %p231
      %p233 = scmp.le.s32.totalorder 1, %s21
      %p234 = scmp.lt.s32.totalorder %s21, 3
      %p235 = pnand %p233, %p234
      %p236 = pneg %p235
      // Predicated region
      $region9: #{tpu_custom_call.1} parent=5 // pred_check
        _
      $region10: #{tpu_custom_call.1} parent=5 // pred_check_branch
        %238 = sbr.rel (%p235) target = $region12
      $region11: #{tpu_custom_call.1} parent=5 // pred_region
        %s239 = ssub.s32 %s21, 1
        // Predicated region
        $region13: #{tpu_custom_call.1} parent=11 // pred_check
          %p240 = pneg %p94
        $region14: #{tpu_custom_call.1} parent=11 // pred_check_branch
          %242 = sbr.rel (%p240) target = $region16
        $region15: #{tpu_custom_call.1} parent=11 // pred_region
          %244 = vsyncadd [#allocation6], 0
          %s245 = sshll.u32 %s2, 4
          %s246 = int_to_ptr.hbm [resolvable:$true] %s245
          %s247 = sshll.u32 [#allocation5], 4
          %s248 = int_to_ptr.vmem [resolvable:$true] %s247
          %253 = dma.hbm_to_vmem [thread:$0]  %s246, 512, %s248, [#allocation6], 128, 128, 8
        $region16: #{tpu_custom_call.1} parent=11 // pred_fallthru
          _
        // Predicated region
        $region17: #{tpu_custom_call.1} parent=11 // pred_check
          %p254 = pneg %p115
        $region18: #{tpu_custom_call.1} parent=11 // pred_check_branch
          %256 = sbr.rel (%p254) target = $region20
        $region19: #{tpu_custom_call.1} parent=11 // pred_region
          _
        $region20: #{tpu_custom_call.1} parent=11 // pred_fallthru
          _
        // Predicated region
        $region21: #{tpu_custom_call.1} parent=11 // pred_check
          %p257 = pneg %p136
        $region22: #{tpu_custom_call.1} parent=11 // pred_check_branch
          %259 = sbr.rel (%p257) target = $region24
        $region23: #{tpu_custom_call.1} parent=11 // pred_region
          _
        $region24: #{tpu_custom_call.1} parent=11 // pred_fallthru
          _
        // Predicated region
        $region25: #{tpu_custom_call.1} parent=11 // pred_check
          %p260 = pneg %p157
        $region26: #{tpu_custom_call.1} parent=11 // pred_check_branch
          %262 = sbr.rel (%p260) target = $region28
        $region27: #{tpu_custom_call.1} parent=11 // pred_region
          _
        $region28: #{tpu_custom_call.1} parent=11 // pred_fallthru
          _
        // Predicated region
        $region29: #{tpu_custom_call.1} parent=11 // pred_check
          %p263 = pneg %p178
        $region30: #{tpu_custom_call.1} parent=11 // pred_check_branch
          %265 = sbr.rel (%p263) target = $region32
        $region31: #{tpu_custom_call.1} parent=11 // pred_region
          %267 = vsyncadd [#allocation6], 0
          %s268 = sshll.u32 %s6, 4
          %s269 = int_to_ptr.hbm [resolvable:$true] %s268
          %s270 = sshll.u32 [#allocation7], 4
          %s271 = int_to_ptr.vmem [resolvable:$true] %s270
          %276 = dma.hbm_to_vmem [thread:$0]  %s269, 512, %s271, [#allocation6], 128, 128, 8
        $region32: #{tpu_custom_call.1} parent=11 // pred_fallthru
          _
        // Predicated region
        $region33: #{tpu_custom_call.1} parent=11 // pred_check
          %p277 = pneg %p199
        $region34: #{tpu_custom_call.1} parent=11 // pred_check_branch
          %279 = sbr.rel (%p277) target = $region36
        $region35: #{tpu_custom_call.1} parent=11 // pred_region
          _
        $region36: #{tpu_custom_call.1} parent=11 // pred_fallthru
          _
      $region12: #{tpu_custom_call.1} parent=5 // pred_fallthru
        _
      %p280 = scmp.lt.s32.totalorder %s21, 2
      // Predicated region
      $region37: #{tpu_custom_call.1} parent=5 // pred_check
        %p281 = pneg %p280
      $region38: #{tpu_custom_call.1} parent=5 // pred_check_branch
        %283 = sbr.rel (%p281) target = $region40
      $region39: #{tpu_custom_call.1} parent=5 // pred_region
        // Predicated region
        $region41: #{tpu_custom_call.1} parent=39 // pred_check
          %p284 = pneg %p41
        $region42: #{tpu_custom_call.1} parent=39 // pred_check_branch
          %286 = sbr.rel (%p284) target = $region44
        $region43: #{tpu_custom_call.1} parent=39 // pred_region
          %s287 = sand.u32 %s31, 1
          %s288 = scalar_lea.sflag [#allocation3], %s287
          %s289 = sand.u32 %s31, 1
          %s290 = smul.addr %s289, 16
          %s291 = scalar_lea.vmem [#allocation2], %s290
          %s292 = smul.u32 2, %s21
          %294 = vsyncadd %s288, 0
          %s295 = smul.addr %s292, 8
          %s296 = scalar_lea.hbm %s0, %s295
          %s297 = sshll.u32 %s296, 4
          %s298 = int_to_ptr.hbm [resolvable:$true] %s297
          %s299 = sshll.u32 %s291, 4
          %s300 = int_to_ptr.vmem [resolvable:$true] %s299
          %305 = dma.hbm_to_vmem [thread:$0]  %s298, 256, %s300, %s288, 128, 128, 8
        $region44: #{tpu_custom_call.1} parent=39 // pred_fallthru
          _
        // Predicated region
        $region45: #{tpu_custom_call.1} parent=39 // pred_check
          %p306 = pneg %p67
        $region46: #{tpu_custom_call.1} parent=39 // pred_check_branch
          %308 = sbr.rel (%p306) target = $region48
        $region47: #{tpu_custom_call.1} parent=39 // pred_region
          %s309 = smul.u32 2, %s21
          %p310 = scmp.lt.s32.totalorder %s309, 3
          %s311 = scalar_select %p310, %s309, 3
          %s312 = smul.addr %s311, 2
          %s313 = smul.addr %s312, 8
          %s314 = scalar_lea.vmem %s1, %s313
          %s315 = smul.u32 2, %s21
        $region48: #{tpu_custom_call.1} parent=39 // pred_fallthru
          _
      $region40: #{tpu_custom_call.1} parent=5 // pred_fallthru
        _
      %p316 = scmp.le.s32.totalorder 1, %s21
      %p317 = scmp.lt.s32.totalorder %s21, 3
      %p318 = pnand %p316, %p317
      %p319 = pneg %p318
      // Predicated region
      $region49: #{tpu_custom_call.1} parent=5 // pred_check
        _
      $region50: #{tpu_custom_call.1} parent=5 // pred_check_branch
        %321 = sbr.rel (%p318) target = $region52
      $region51: #{tpu_custom_call.1} parent=5 // pred_region
        %s322 = ssub.s32 %s21, 1
        %s323 = sand.u32 %s34, 1
        %s324 = scalar_lea.sflag [#allocation3], %s323
        %s325 = sand.u32 %s34, 1
        %s326 = smul.addr %s325, 16
        %s327 = scalar_lea.vmem [#allocation2], %s326
        // Predicated region
        $region53: #{tpu_custom_call.1} parent=51 // pred_check
          %p328 = pneg %p47
        $region54: #{tpu_custom_call.1} parent=51 // pred_check_branch
          %330 = sbr.rel (%p328) target = $region56
        $region55: #{tpu_custom_call.1} parent=51 // pred_region
          %332 = dma.done %s324, 256
        $region56: #{tpu_custom_call.1} parent=51 // pred_fallthru
          _
        // Predicated region
        $region57: #{tpu_custom_call.1} parent=51 // pred_check
          %p333 = pneg %p94
        $region58: #{tpu_custom_call.1} parent=51 // pred_check_branch
          %335 = sbr.rel (%p333) target = $region60
        $region59: #{tpu_custom_call.1} parent=51 // pred_region
          %337 = dma.done [#allocation6], 512
        $region60: #{tpu_custom_call.1} parent=51 // pred_fallthru
          _
        // Predicated region
        $region61: #{tpu_custom_call.1} parent=51 // pred_check
          %p338 = pneg %p178
        $region62: #{tpu_custom_call.1} parent=51 // pred_check_branch
          %340 = sbr.rel (%p338) target = $region64
        $region63: #{tpu_custom_call.1} parent=51 // pred_region
          %342 = dma.done [#allocation6], 512
        $region64: #{tpu_custom_call.1} parent=51 // pred_fallthru
          _
        %s343 = sand.u32 %s34, 1
        %s344 = scalar_lea.sflag [#allocation3], %s343
        %s345 = sand.u32 %s34, 1
        %s346 = smul.addr %s345, 16
        %s347 = scalar_lea.vmem [#allocation2], %s346
        %p348 = pneg %p47
        %p349 = pneg %p44
        %s350 = smul.u32 2, %s26
        %p351 = scmp.lt.s32.totalorder %s350, 3
        %s352 = scalar_select %p351, %s350, 3
        %s353 = smul.addr %s352, 2
        %s354 = smul.addr %s353, 8
        %s355 = scalar_lea.vmem %s1, %s354
        %p356 = pneg %p73
        %p357 = pneg %p70
        %p358 = pneg %p94
        %p359 = pneg %p91
        %p360 = pneg %p115
        %p361 = pneg %p112
        %p362 = pneg %p136
        %p363 = pneg %p133
        %p364 = pneg %p157
        %p365 = pneg %p154
        %p366 = pneg %p178
        %p367 = pneg %p175
        %p368 = pneg %p199
        %p369 = pneg %p196
        %p370 = pneg %p225
        %p371 = pneg %p222
        %s372 = sand.u32 %s212, 1
        %s373 = scalar_lea.sflag [#allocation4], %s372
        %s374 = sand.u32 %s212, 1
        %s375 = smul.addr %s374, 16
        %s376 = scalar_lea.vmem [#allocation8], %s375
        %s377 = smul.u32 2, %s26
        %s378 = smul.u32 2, %s26
        %p379 = scmp.lt.s32.totalorder %s378, 3
        %s380 = scalar_select %p379, %s378, 3
        %s381 = smul.addr %s380, 2
        %s382 = smul.addr %s381, 8
        %s383 = scalar_lea.vmem %s1, %s382
        %s384 = smul.u32 2, %s26
        %s385 = smul.u32 2, %s26
        %v386 = vld [vmem:[#allocation5] sm:$0xff]
        %v387 = vld [vmem:[#allocation5 + $0x8] sm:$0xff]
        %v388 = vld [vmem:[#allocation5 + $0x10] sm:$0xff]
        %v389 = vld [vmem:[#allocation5 + $0x18] sm:$0xff]
        %v390 = vld [vmem:[%s4] sm:$0xff]
        %v391 = vld [vmem:[%s4 + $0x8] sm:$0xff]
        %v392 = vld [vmem:[%s4 + $0x10] sm:$0xff]
        %v393 = vld [vmem:[%s4 + $0x18] sm:$0xff]
        %v394 = vld [vmem:[%s4 + $0x20] sm:$0xff]
        %v395 = vld [vmem:[%s4 + $0x28] sm:$0xff]
        %v396 = vld [vmem:[#allocation7] sm:$0xff]
        %v397 = vld [vmem:[#allocation7 + $0x8] sm:$0xff]
        %v398 = vld [vmem:[#allocation7 + $0x10] sm:$0xff]
        %v399 = vld [vmem:[#allocation7 + $0x18] sm:$0xff]
        %v400 = vld [vmem:[%s3] sm:$0x1]
        %v401 = vld [vmem:[%s5] sm:$0x1]
        %v402 = vld [vmem:[%s7] sm:$0x1]
        %v403 = vld [vmem:[%s327] sm:$0xff]
        %v404 = vld [vmem:[%s327 + $0x8] sm:$0xff]
        %v405 = vld [vmem:[%s383] sm:$0xff]
        %v406 = vld [vmem:[%s383 + $0x8] sm:$0xff]
        %v407 = vld [vmem:[%s383 + $0x10] sm:$0xff]
        %v408 = vld [vmem:[%s383 + $0x18] sm:$0xff]
        %v410 = vperm.slane %v400, 0
        %vm412 = vcmask 261120
        %v414 = vsel %vm412, %v403, 0
        %v417 = vsel %vm412, %v404, 0
        %419 = vmatpush.msra.mxu0 0.0
        %420 = vmatpush.msra.mxu0 0.0
        %421 = vmatpush.msra.mxu0 0.0
        %422 = vmatpush.msra.mxu0 0.0
        %423 = vmatpush.msra.mxu0 0.0
        %424 = vmatpush.msra.mxu0 0.0
        %425 = vmatpush.msra.mxu0 0.0
        %426 = vmatpush.msra.mxu0 0.0
        %427 = vmatpush.msra.mxu0 0.0
        %428 = vmatpush.msra.mxu0 0.0
        %429 = vmatpush.msra.mxu0 0.0
        %430 = vmatpush.msra.mxu0 0.0
        %431 = vmatpush.msra.mxu0 %v389
        %432 = vmatpush.msra.mxu0 %v388
        %433 = vmatpush.msra.mxu0 %v387
        %434 = vmatpush.msra.mxu0 %v386
        %435 = vmatmul.f32.gmra.mxu0 %v414
        %v436 = vpop.f32.mrf.mxu0
        %v437 = vadd.f32 %v410, %v436
        %438 = vmatmul.f32.gmra.mxu0 %v417
        %v439 = vpop.f32.mrf.mxu0
        %v440 = vadd.f32 %v410, %v439
        %441 = vdwg.mxu0
        %v443 = vperm.slane %v401, 0
        %vm445 = vcmask 392192
        %v447 = vsel %vm445, %v405, 0
        %v450 = vsel %vm445, %v406, 0
        %v453 = vsel %vm445, %v407, 0
        %v456 = vsel %vm445, %v408, 0
        %458 = vmatpush.msra.mxu0 0.0
        %459 = vmatpush.msra.mxu0 0.0
        %460 = vmatpush.msra.mxu0 0.0
        %461 = vmatpush.msra.mxu0 0.0
        %462 = vmatpush.msra.mxu0 0.0
        %463 = vmatpush.msra.mxu0 0.0
        %464 = vmatpush.msra.mxu0 0.0
        %465 = vmatpush.msra.mxu0 0.0
        %466 = vmatpush.msra.mxu0 0.0
        %467 = vmatpush.msra.mxu0 0.0
        %468 = vmatpush.msra.mxu0 %v395
        %469 = vmatpush.msra.mxu0 %v394
        %470 = vmatpush.msra.mxu0 %v393
        %471 = vmatpush.msra.mxu0 %v392
        %472 = vmatpush.msra.mxu0 %v391
        %473 = vmatpush.msra.mxu0 %v390
        %474 = vmatmul.f32.gmra.mxu0 %v447
        %v475 = vpop.f32.mrf.mxu0
        %v476 = vadd.f32 %v443, %v475
        %477 = vmatmul.f32.gmra.mxu0 %v450
        %v478 = vpop.f32.mrf.mxu0
        %v479 = vadd.f32 %v443, %v478
        %480 = vmatmul.f32.gmra.mxu0 %v453
        %v481 = vpop.f32.mrf.mxu0
        %v482 = vadd.f32 %v443, %v481
        %483 = vmatmul.f32.gmra.mxu0 %v456
        %v484 = vpop.f32.mrf.mxu0
        %v485 = vadd.f32 %v443, %v484
        %486 = vdwg.mxu0
        %vm487 = vcmask 64512
        %v489 = vsel %vm487, %v437, 0
        %v492 = vsel %vm487, %v476, 0
        %v495 = vsel %vm487, %v479, 0
        %497 = vmatpush.xpose.msra.mxu0 0.0
        %498 = vmatpush.xpose.msra.mxu0 0.0
        %499 = vmatpush.xpose.msra.mxu0 0.0
        %500 = vmatpush.xpose.msra.mxu0 0.0
        %501 = vmatpush.xpose.msra.mxu0 0.0
        %502 = vmatpush.xpose.msra.mxu0 0.0
        %503 = vmatpush.xpose.msra.mxu0 0.0
        %504 = vmatpush.xpose.msra.mxu0 0.0
        %505 = vmatpush.xpose.msra.mxu0 0.0
        %506 = vmatpush.xpose.msra.mxu0 0.0
        %507 = vmatpush.xpose.msra.mxu0 0.0
        %508 = vmatpush.xpose.msra.mxu0 0.0
        %509 = vmatpush.xpose.msra.mxu0 0.0
        %510 = vmatpush.xpose.msra.mxu0 0.0
        %511 = vmatpush.xpose.msra.mxu0 %v495
        %512 = vmatpush.xpose.msra.mxu0 %v492
        %513 = vmatmul.f32.gmra.mxu0 %v489
        %v514 = vpop.f32.mrf.mxu0
        %v515 = vadd.f32 0.0, %v514
        %516 = vdwg.mxu0
        %v518 = vsel %vm487, %v440, 0
        %v521 = vsel %vm487, %v482, 0
        %v524 = vsel %vm487, %v485, 0
        %526 = vmatpush.xpose.msra.mxu0 0.0
        %527 = vmatpush.xpose.msra.mxu0 0.0
        %528 = vmatpush.xpose.msra.mxu0 0.0
        %529 = vmatpush.xpose.msra.mxu0 0.0
        %530 = vmatpush.xpose.msra.mxu0 0.0
        %531 = vmatpush.xpose.msra.mxu0 0.0
        %532 = vmatpush.xpose.msra.mxu0 0.0
        %533 = vmatpush.xpose.msra.mxu0 0.0
        %534 = vmatpush.xpose.msra.mxu0 0.0
        %535 = vmatpush.xpose.msra.mxu0 0.0
        %536 = vmatpush.xpose.msra.mxu0 0.0
        %537 = vmatpush.xpose.msra.mxu0 0.0
        %538 = vmatpush.xpose.msra.mxu0 0.0
        %539 = vmatpush.xpose.msra.mxu0 0.0
        %540 = vmatpush.xpose.msra.mxu0 %v524
        %541 = vmatpush.xpose.msra.mxu0 %v521
        %542 = vmatmul.f32.gmra.mxu0 %v518
        %v543 = vpop.f32.mrf.mxu0
        %v544 = vadd.f32 0.0, %v543
        %545 = vdwg.mxu0
        %vm546 = vcmask 130048
        %v547 = vsel %vm546, %v515, -inf
        %548 = vmax.xlane.f32.xlu0 %v547
        %v549 = vpop.xlane.xlu0 %548
        %v550 = vsel %vm546, %v544, -inf
        %551 = vmax.xlane.f32.xlu0 %v550
        %v552 = vpop.xlane.xlu0 %551
        %v553 = vsub.f32 %v515, %v549
        %v554 = vsub.f32 %v544, %v552
        %v555 = vmul.f32 %v553, 1.442695
        %v556 = vpow.pop %v555
        %v557 = vmul.f32 %v554, 1.442695
        %v558 = vpow.pop %v557
        %v559 = vsel %vm546, %v556, 0.0
        %560 = vadd.xlane.f32.xlu0 %v559
        %v561 = vpop.xlane.xlu0 %560
        %v562 = vsel %vm546, %v558, 0.0
        %563 = vadd.xlane.f32.xlu0 %v562
        %v564 = vpop.xlane.xlu0 %563
        %565 = vrot.lane.b32.xlu0 %v476, 112
        %v566 = vpop.permute.xlu0 %565
        %567 = vrot.lane.b32.xlu0 %v479, 112
        %v568 = vpop.permute.xlu0 %567
        %v572 = vsel %vm546, %v556, 0
        %574 = vmatpush.msra.mxu0 0.0
        %575 = vmatpush.msra.mxu0 0.0
        %576 = vmatpush.msra.mxu0 0.0
        %577 = vmatpush.msra.mxu0 0.0
        %578 = vmatpush.msra.mxu0 0.0
        %579 = vmatpush.msra.mxu0 0.0
        %580 = vmatpush.msra.mxu0 0.0
        %581 = vmatpush.msra.mxu0 0.0
        %582 = vmatpush.msra.mxu0 0.0
        %583 = vmatpush.msra.mxu0 0.0
        %584 = vmatpush.msra.mxu0 0.0
        %585 = vmatpush.msra.mxu0 0.0
        %586 = vmatpush.msra.mxu0 0.0
        %587 = vmatpush.msra.mxu0 0.0
        %588 = vmatpush.msra.mxu0 %v568
        %589 = vmatpush.msra.mxu0 %v566
        %590 = vmatmul.f32.gmra.mxu0 %v572
        %v591 = vpop.f32.mrf.mxu0
        %v592 = vadd.f32 0.0, %v591
        %593 = vdwg.mxu0
        %594 = vrot.lane.b32.xlu0 %v482, 112
        %v595 = vpop.permute.xlu0 %594
        %596 = vrot.lane.b32.xlu0 %v485, 112
        %v597 = vpop.permute.xlu0 %596
        %v601 = vsel %vm546, %v558, 0
        %603 = vmatpush.msra.mxu0 0.0
        %604 = vmatpush.msra.mxu0 0.0
        %605 = vmatpush.msra.mxu0 0.0
        %606 = vmatpush.msra.mxu0 0.0
        %607 = vmatpush.msra.mxu0 0.0
        %608 = vmatpush.msra.mxu0 0.0
        %609 = vmatpush.msra.mxu0 0.0
        %610 = vmatpush.msra.mxu0 0.0
        %611 = vmatpush.msra.mxu0 0.0
        %612 = vmatpush.msra.mxu0 0.0
        %613 = vmatpush.msra.mxu0 0.0
        %614 = vmatpush.msra.mxu0 0.0
        %615 = vmatpush.msra.mxu0 0.0
        %616 = vmatpush.msra.mxu0 0.0
        %617 = vmatpush.msra.mxu0 %v597
        %618 = vmatpush.msra.mxu0 %v595
        %619 = vmatmul.f32.gmra.mxu0 %v601
        %v620 = vpop.f32.mrf.mxu0
        %v621 = vadd.f32 0.0, %v620
        %622 = vdwg.mxu0
        %v623 = vrcp.pop %v561
        %v624 = vmul.f32 %v561, %v623
        %v625 = vsub.f32 1.0, %v624
        %v626 = vmul.f32 %v623, %v625
        %v627 = vadd.f32 %v623, %v626
        %vm628 = vweird.f32 %v561
        %vm629 = vweird.f32 %v623
        %vm630 = vmor %vm628, %vm629
        %v631 = vsel %vm630, %v623, %v627
        %v632 = vand.u32 2147483647, %v561
        %vm633 = vcmp.eq.f32.partialorder %v632, 8.507059e+37
        %v634 = vand.u32 %v561, 2147483648
        %v635 = vor.u32 1.1754944e-38, %v634
        %v636 = vsel %vm633, %v635, %v631
        %v637 = vmul.f32 %v592, %v636
        %v638 = vrcp.pop %v564
        %v639 = vmul.f32 %v564, %v638
        %v640 = vsub.f32 1.0, %v639
        %v641 = vmul.f32 %v638, %v640
        %v642 = vadd.f32 %v638, %v641
        %vm643 = vweird.f32 %v564
        %vm644 = vweird.f32 %v638
        %vm645 = vmor %vm643, %vm644
        %v646 = vsel %vm645, %v638, %v642
        %v647 = vand.u32 2147483647, %v564
        %vm648 = vcmp.eq.f32.partialorder %v647, 8.507059e+37
        %v649 = vand.u32 %v564, 2147483648
        %v650 = vor.u32 1.1754944e-38, %v649
        %v651 = vsel %vm648, %v650, %v646
        %v652 = vmul.f32 %v621, %v651
        %653 = vrot.lane.b32.xlu0 %v437, 120
        %v654 = vpop.permute.xlu0 %653
        %v655 = vsel %vm487, %v654, 0
        %657 = vmatpush.xpose.msra.mxu0 0.0
        %658 = vmatpush.xpose.msra.mxu0 0.0
        %659 = vmatpush.xpose.msra.mxu0 0.0
        %660 = vmatpush.xpose.msra.mxu0 0.0
        %661 = vmatpush.xpose.msra.mxu0 0.0
        %662 = vmatpush.xpose.msra.mxu0 0.0
        %663 = vmatpush.xpose.msra.mxu0 0.0
        %664 = vmatpush.xpose.msra.mxu0 0.0
        %665 = vmatpush.xpose.msra.mxu0 0.0
        %666 = vmatpush.xpose.msra.mxu0 0.0
        %667 = vmatpush.xpose.msra.mxu0 0.0
        %668 = vmatpush.xpose.msra.mxu0 0.0
        %669 = vmatpush.xpose.msra.mxu0 0.0
        %670 = vmatpush.xpose.msra.mxu0 0.0
        %671 = vmatpush.xpose.msra.mxu0 %v495
        %672 = vmatpush.xpose.msra.mxu0 %v492
        %673 = vmatmul.f32.gmra.mxu0 %v655
        %v674 = vpop.f32.mrf.mxu0
        %v675 = vadd.f32 0.0, %v674
        %676 = vdwg.mxu0
        %677 = vrot.lane.b32.xlu0 %v440, 120
        %v678 = vpop.permute.xlu0 %677
        %v679 = vsel %vm487, %v678, 0
        %681 = vmatpush.xpose.msra.mxu0 0.0
        %682 = vmatpush.xpose.msra.mxu0 0.0
        %683 = vmatpush.xpose.msra.mxu0 0.0
        %684 = vmatpush.xpose.msra.mxu0 0.0
        %685 = vmatpush.xpose.msra.mxu0 0.0
        %686 = vmatpush.xpose.msra.mxu0 0.0
        %687 = vmatpush.xpose.msra.mxu0 0.0
        %688 = vmatpush.xpose.msra.mxu0 0.0
        %689 = vmatpush.xpose.msra.mxu0 0.0
        %690 = vmatpush.xpose.msra.mxu0 0.0
        %691 = vmatpush.xpose.msra.mxu0 0.0
        %692 = vmatpush.xpose.msra.mxu0 0.0
        %693 = vmatpush.xpose.msra.mxu0 0.0
        %694 = vmatpush.xpose.msra.mxu0 0.0
        %695 = vmatpush.xpose.msra.mxu0 %v524
        %696 = vmatpush.xpose.msra.mxu0 %v521
        %697 = vmatmul.f32.gmra.mxu0 %v679
        %v698 = vpop.f32.mrf.mxu0
        %v699 = vadd.f32 0.0, %v698
        %700 = vdwg.mxu0
        %v701 = vsel %vm546, %v675, -inf
        %702 = vmax.xlane.f32.xlu0 %v701
        %v703 = vpop.xlane.xlu0 %702
        %v704 = vsel %vm546, %v699, -inf
        %705 = vmax.xlane.f32.xlu0 %v704
        %v706 = vpop.xlane.xlu0 %705
        %v707 = vsub.f32 %v675, %v703
        %v708 = vsub.f32 %v699, %v706
        %v709 = vmul.f32 %v707, 1.442695
        %v710 = vpow.pop %v709
        %v711 = vmul.f32 %v708, 1.442695
        %v712 = vpow.pop %v711
        %v713 = vsel %vm546, %v710, 0.0
        %714 = vadd.xlane.f32.xlu0 %v713
        %v715 = vpop.xlane.xlu0 %714
        %v716 = vsel %vm546, %v712, 0.0
        %717 = vadd.xlane.f32.xlu0 %v716
        %v718 = vpop.xlane.xlu0 %717
        %v720 = vsel %vm546, %v710, 0
        %722 = vmatpush.msra.mxu0 0.0
        %723 = vmatpush.msra.mxu0 0.0
        %724 = vmatpush.msra.mxu0 0.0
        %725 = vmatpush.msra.mxu0 0.0
        %726 = vmatpush.msra.mxu0 0.0
        %727 = vmatpush.msra.mxu0 0.0
        %728 = vmatpush.msra.mxu0 0.0
        %729 = vmatpush.msra.mxu0 0.0
        %730 = vmatpush.msra.mxu0 0.0
        %731 = vmatpush.msra.mxu0 0.0
        %732 = vmatpush.msra.mxu0 0.0
        %733 = vmatpush.msra.mxu0 0.0
        %734 = vmatpush.msra.mxu0 0.0
        %735 = vmatpush.msra.mxu0 0.0
        %736 = vmatpush.msra.mxu0 %v568
        %737 = vmatpush.msra.mxu0 %v566
        %738 = vmatmul.f32.gmra.mxu0 %v720
        %v739 = vpop.f32.mrf.mxu0
        %v740 = vadd.f32 0.0, %v739
        %741 = vdwg.mxu0
        %v743 = vsel %vm546, %v712, 0
        %745 = vmatpush.msra.mxu0 0.0
        %746 = vmatpush.msra.mxu0 0.0
        %747 = vmatpush.msra.mxu0 0.0
        %748 = vmatpush.msra.mxu0 0.0
        %749 = vmatpush.msra.mxu0 0.0
        %750 = vmatpush.msra.mxu0 0.0
        %751 = vmatpush.msra.mxu0 0.0
        %752 = vmatpush.msra.mxu0 0.0
        %753 = vmatpush.msra.mxu0 0.0
        %754 = vmatpush.msra.mxu0 0.0
        %755 = vmatpush.msra.mxu0 0.0
        %756 = vmatpush.msra.mxu0 0.0
        %757 = vmatpush.msra.mxu0 0.0
        %758 = vmatpush.msra.mxu0 0.0
        %759 = vmatpush.msra.mxu0 %v597
        %760 = vmatpush.msra.mxu0 %v595
        %761 = vmatmul.f32.gmra.mxu0 %v743
        %v762 = vpop.f32.mrf.mxu0
        %v763 = vadd.f32 0.0, %v762
        %764 = vdwg.mxu0
        %v765 = vrcp.pop %v715
        %v766 = vmul.f32 %v715, %v765
        %v767 = vsub.f32 1.0, %v766
        %v768 = vmul.f32 %v765, %v767
        %v769 = vadd.f32 %v765, %v768
        %vm770 = vweird.f32 %v715
        %vm771 = vweird.f32 %v765
        %vm772 = vmor %vm770, %vm771
        %v773 = vsel %vm772, %v765, %v769
        %v774 = vand.u32 2147483647, %v715
        %vm775 = vcmp.eq.f32.partialorder %v774, 8.507059e+37
        %v776 = vand.u32 %v715, 2147483648
        %v777 = vor.u32 1.1754944e-38, %v776
        %v778 = vsel %vm775, %v777, %v773
        %v779 = vmul.f32 %v740, %v778
        %v780 = vrcp.pop %v718
        %v781 = vmul.f32 %v718, %v780
        %v782 = vsub.f32 1.0, %v781
        %v783 = vmul.f32 %v780, %v782
        %v784 = vadd.f32 %v780, %v783
        %vm785 = vweird.f32 %v718
        %vm786 = vweird.f32 %v780
        %vm787 = vmor %vm785, %vm786
        %v788 = vsel %vm787, %v780, %v784
        %v789 = vand.u32 2147483647, %v718
        %vm790 = vcmp.eq.f32.partialorder %v789, 8.507059e+37
        %v791 = vand.u32 %v718, 2147483648
        %v792 = vor.u32 1.1754944e-38, %v791
        %v793 = vsel %vm790, %v792, %v788
        %v794 = vmul.f32 %v763, %v793
        %795 = vrot.lane.b32.xlu0 %v437, 112
        %v796 = vpop.permute.xlu0 %795
        %797 = vrot.lane.b32.xlu0 %v476, 120
        %v798 = vpop.permute.xlu0 %797
        %799 = vrot.lane.b32.xlu0 %v479, 120
        %v800 = vpop.permute.xlu0 %799
        %v801 = vsel %vm487, %v796, 0
        %v803 = vsel %vm487, %v798, 0
        %v805 = vsel %vm487, %v800, 0
        %807 = vmatpush.xpose.msra.mxu0 0.0
        %808 = vmatpush.xpose.msra.mxu0 0.0
        %809 = vmatpush.xpose.msra.mxu0 0.0
        %810 = vmatpush.xpose.msra.mxu0 0.0
        %811 = vmatpush.xpose.msra.mxu0 0.0
        %812 = vmatpush.xpose.msra.mxu0 0.0
        %813 = vmatpush.xpose.msra.mxu0 0.0
        %814 = vmatpush.xpose.msra.mxu0 0.0
        %815 = vmatpush.xpose.msra.mxu0 0.0
        %816 = vmatpush.xpose.msra.mxu0 0.0
        %817 = vmatpush.xpose.msra.mxu0 0.0
        %818 = vmatpush.xpose.msra.mxu0 0.0
        %819 = vmatpush.xpose.msra.mxu0 0.0
        %820 = vmatpush.xpose.msra.mxu0 0.0
        %821 = vmatpush.xpose.msra.mxu0 %v805
        %822 = vmatpush.xpose.msra.mxu0 %v803
        %823 = vmatmul.f32.gmra.mxu0 %v801
        %v824 = vpop.f32.mrf.mxu0
        %v825 = vadd.f32 0.0, %v824
        %826 = vdwg.mxu0
        %827 = vrot.lane.b32.xlu0 %v440, 112
        %v828 = vpop.permute.xlu0 %827
        %829 = vrot.lane.b32.xlu0 %v482, 120
        %v830 = vpop.permute.xlu0 %829
        %831 = vrot.lane.b32.xlu0 %v485, 120
        %v832 = vpop.permute.xlu0 %831
        %v833 = vsel %vm487, %v828, 0
        %v835 = vsel %vm487, %v830, 0
        %v837 = vsel %vm487, %v832, 0
        %839 = vmatpush.xpose.msra.mxu0 0.0
        %840 = vmatpush.xpose.msra.mxu0 0.0
        %841 = vmatpush.xpose.msra.mxu0 0.0
        %842 = vmatpush.xpose.msra.mxu0 0.0
        %843 = vmatpush.xpose.msra.mxu0 0.0
        %844 = vmatpush.xpose.msra.mxu0 0.0
        %845 = vmatpush.xpose.msra.mxu0 0.0
        %846 = vmatpush.xpose.msra.mxu0 0.0
        %847 = vmatpush.xpose.msra.mxu0 0.0
        %848 = vmatpush.xpose.msra.mxu0 0.0
        %849 = vmatpush.xpose.msra.mxu0 0.0
        %850 = vmatpush.xpose.msra.mxu0 0.0
        %851 = vmatpush.xpose.msra.mxu0 0.0
        %852 = vmatpush.xpose.msra.mxu0 0.0
        %853 = vmatpush.xpose.msra.mxu0 %v837
        %854 = vmatpush.xpose.msra.mxu0 %v835
        %855 = vmatmul.f32.gmra.mxu0 %v833
        %v856 = vpop.f32.mrf.mxu0
        %v857 = vadd.f32 0.0, %v856
        %858 = vdwg.mxu0
        %v859 = vsel %vm546, %v825, -inf
        %860 = vmax.xlane.f32.xlu0 %v859
        %v861 = vpop.xlane.xlu0 %860
        %v862 = vsel %vm546, %v857, -inf
        %863 = vmax.xlane.f32.xlu0 %v862
        %v864 = vpop.xlane.xlu0 %863
        %v865 = vsub.f32 %v825, %v861
        %v866 = vsub.f32 %v857, %v864
        %v867 = vmul.f32 %v865, 1.442695
        %v868 = vpow.pop %v867
        %v869 = vmul.f32 %v866, 1.442695
        %v870 = vpow.pop %v869
        %v871 = vsel %vm546, %v868, 0.0
        %872 = vadd.xlane.f32.xlu0 %v871
        %v873 = vpop.xlane.xlu0 %872
        %v874 = vsel %vm546, %v870, 0.0
        %875 = vadd.xlane.f32.xlu0 %v874
        %v876 = vpop.xlane.xlu0 %875
        %877 = vrot.lane.b32.xlu0 %v476, 104
        %v878 = vpop.permute.xlu0 %877
        %879 = vrot.lane.b32.xlu0 %v479, 104
        %v880 = vpop.permute.xlu0 %879
        %v884 = vsel %vm546, %v868, 0
        %886 = vmatpush.msra.mxu0 0.0
        %887 = vmatpush.msra.mxu0 0.0
        %888 = vmatpush.msra.mxu0 0.0
        %889 = vmatpush.msra.mxu0 0.0
        %890 = vmatpush.msra.mxu0 0.0
        %891 = vmatpush.msra.mxu0 0.0
        %892 = vmatpush.msra.mxu0 0.0
        %893 = vmatpush.msra.mxu0 0.0
        %894 = vmatpush.msra.mxu0 0.0
        %895 = vmatpush.msra.mxu0 0.0
        %896 = vmatpush.msra.mxu0 0.0
        %897 = vmatpush.msra.mxu0 0.0
        %898 = vmatpush.msra.mxu0 0.0
        %899 = vmatpush.msra.mxu0 0.0
        %900 = vmatpush.msra.mxu0 %v880
        %901 = vmatpush.msra.mxu0 %v878
        %902 = vmatmul.f32.gmra.mxu0 %v884
        %v903 = vpop.f32.mrf.mxu0
        %v904 = vadd.f32 0.0, %v903
        %905 = vdwg.mxu0
        %906 = vrot.lane.b32.xlu0 %v482, 104
        %v907 = vpop.permute.xlu0 %906
        %908 = vrot.lane.b32.xlu0 %v485, 104
        %v909 = vpop.permute.xlu0 %908
        %v913 = vsel %vm546, %v870, 0
        %915 = vmatpush.msra.mxu0 0.0
        %916 = vmatpush.msra.mxu0 0.0
        %917 = vmatpush.msra.mxu0 0.0
        %918 = vmatpush.msra.mxu0 0.0
        %919 = vmatpush.msra.mxu0 0.0
        %920 = vmatpush.msra.mxu0 0.0
        %921 = vmatpush.msra.mxu0 0.0
        %922 = vmatpush.msra.mxu0 0.0
        %923 = vmatpush.msra.mxu0 0.0
        %924 = vmatpush.msra.mxu0 0.0
        %925 = vmatpush.msra.mxu0 0.0
        %926 = vmatpush.msra.mxu0 0.0
        %927 = vmatpush.msra.mxu0 0.0
        %928 = vmatpush.msra.mxu0 0.0
        %929 = vmatpush.msra.mxu0 %v909
        %930 = vmatpush.msra.mxu0 %v907
        %931 = vmatmul.f32.gmra.mxu0 %v913
        %v932 = vpop.f32.mrf.mxu0
        %v933 = vadd.f32 0.0, %v932
        %934 = vdwg.mxu0
        %v935 = vrcp.pop %v873
        %v936 = vmul.f32 %v873, %v935
        %v937 = vsub.f32 1.0, %v936
        %v938 = vmul.f32 %v935, %v937
        %v939 = vadd.f32 %v935, %v938
        %vm940 = vweird.f32 %v873
        %vm941 = vweird.f32 %v935
        %vm942 = vmor %vm940, %vm941
        %v943 = vsel %vm942, %v935, %v939
        %v944 = vand.u32 2147483647, %v873
        %vm945 = vcmp.eq.f32.partialorder %v944, 8.507059e+37
        %v946 = vand.u32 %v873, 2147483648
        %v947 = vor.u32 1.1754944e-38, %v946
        %v948 = vsel %vm945, %v947, %v943
        %v949 = vmul.f32 %v904, %v948
        %v950 = vrcp.pop %v876
        %v951 = vmul.f32 %v876, %v950
        %v952 = vsub.f32 1.0, %v951
        %v953 = vmul.f32 %v950, %v952
        %v954 = vadd.f32 %v950, %v953
        %vm955 = vweird.f32 %v876
        %vm956 = vweird.f32 %v950
        %vm957 = vmor %vm955, %vm956
        %v958 = vsel %vm957, %v950, %v954
        %v959 = vand.u32 2147483647, %v876
        %vm960 = vcmp.eq.f32.partialorder %v959, 8.507059e+37
        %v961 = vand.u32 %v876, 2147483648
        %v962 = vor.u32 1.1754944e-38, %v961
        %v963 = vsel %vm960, %v962, %v958
        %v964 = vmul.f32 %v933, %v963
        %965 = vrot.lane.b32.xlu0 %v437, 104
        %v966 = vpop.permute.xlu0 %965
        %v967 = vsel %vm487, %v966, 0
        %969 = vmatpush.xpose.msra.mxu0 0.0
        %970 = vmatpush.xpose.msra.mxu0 0.0
        %971 = vmatpush.xpose.msra.mxu0 0.0
        %972 = vmatpush.xpose.msra.mxu0 0.0
        %973 = vmatpush.xpose.msra.mxu0 0.0
        %974 = vmatpush.xpose.msra.mxu0 0.0
        %975 = vmatpush.xpose.msra.mxu0 0.0
        %976 = vmatpush.xpose.msra.mxu0 0.0
        %977 = vmatpush.xpose.msra.mxu0 0.0
        %978 = vmatpush.xpose.msra.mxu0 0.0
        %979 = vmatpush.xpose.msra.mxu0 0.0
        %980 = vmatpush.xpose.msra.mxu0 0.0
        %981 = vmatpush.xpose.msra.mxu0 0.0
        %982 = vmatpush.xpose.msra.mxu0 0.0
        %983 = vmatpush.xpose.msra.mxu0 %v805
        %984 = vmatpush.xpose.msra.mxu0 %v803
        %985 = vmatmul.f32.gmra.mxu0 %v967
        %v986 = vpop.f32.mrf.mxu0
        %v987 = vadd.f32 0.0, %v986
        %988 = vdwg.mxu0
        %989 = vrot.lane.b32.xlu0 %v440, 104
        %v990 = vpop.permute.xlu0 %989
        %v991 = vsel %vm487, %v990, 0
        %993 = vmatpush.xpose.msra.mxu0 0.0
        %994 = vmatpush.xpose.msra.mxu0 0.0
        %995 = vmatpush.xpose.msra.mxu0 0.0
        %996 = vmatpush.xpose.msra.mxu0 0.0
        %997 = vmatpush.xpose.msra.mxu0 0.0
        %998 = vmatpush.xpose.msra.mxu0 0.0
        %999 = vmatpush.xpose.msra.mxu0 0.0
        %1000 = vmatpush.xpose.msra.mxu0 0.0
        %1001 = vmatpush.xpose.msra.mxu0 0.0
        %1002 = vmatpush.xpose.msra.mxu0 0.0
        %1003 = vmatpush.xpose.msra.mxu0 0.0
        %1004 = vmatpush.xpose.msra.mxu0 0.0
        %1005 = vmatpush.xpose.msra.mxu0 0.0
        %1006 = vmatpush.xpose.msra.mxu0 0.0
        %1007 = vmatpush.xpose.msra.mxu0 %v837
        %1008 = vmatpush.xpose.msra.mxu0 %v835
        %1009 = vmatmul.f32.gmra.mxu0 %v991
        %v1010 = vpop.f32.mrf.mxu0
        %v1011 = vadd.f32 0.0, %v1010
        %1012 = vdwg.mxu0
        %v1013 = vsel %vm546, %v987, -inf
        %1014 = vmax.xlane.f32.xlu0 %v1013
        %v1015 = vpop.xlane.xlu0 %1014
        %v1016 = vsel %vm546, %v1011, -inf
        %1017 = vmax.xlane.f32.xlu0 %v1016
        %v1018 = vpop.xlane.xlu0 %1017
        %v1019 = vsub.f32 %v987, %v1015
        %v1020 = vsub.f32 %v1011, %v1018
        %v1021 = vmul.f32 %v1019, 1.442695
        %v1022 = vpow.pop %v1021
        %v1023 = vmul.f32 %v1020, 1.442695
        %v1024 = vpow.pop %v1023
        %v1025 = vsel %vm546, %v1022, 0.0
        %1026 = vadd.xlane.f32.xlu0 %v1025
        %v1027 = vpop.xlane.xlu0 %1026
        %v1028 = vsel %vm546, %v1024, 0.0
        %1029 = vadd.xlane.f32.xlu0 %v1028
        %v1030 = vpop.xlane.xlu0 %1029
        %v1032 = vsel %vm546, %v1022, 0
        %1034 = vmatpush.msra.mxu0 0.0
        %1035 = vmatpush.msra.mxu0 0.0
        %1036 = vmatpush.msra.mxu0 0.0
        %1037 = vmatpush.msra.mxu0 0.0
        %1038 = vmatpush.msra.mxu0 0.0
        %1039 = vmatpush.msra.mxu0 0.0
        %1040 = vmatpush.msra.mxu0 0.0
        %1041 = vmatpush.msra.mxu0 0.0
        %1042 = vmatpush.msra.mxu0 0.0
        %1043 = vmatpush.msra.mxu0 0.0
        %1044 = vmatpush.msra.mxu0 0.0
        %1045 = vmatpush.msra.mxu0 0.0
        %1046 = vmatpush.msra.mxu0 0.0
        %1047 = vmatpush.msra.mxu0 0.0
        %1048 = vmatpush.msra.mxu0 %v880
        %1049 = vmatpush.msra.mxu0 %v878
        %1050 = vmatmul.f32.gmra.mxu0 %v1032
        %v1051 = vpop.f32.mrf.mxu0
        %v1052 = vadd.f32 0.0, %v1051
        %1053 = vdwg.mxu0
        %v1055 = vsel %vm546, %v1024, 0
        %1057 = vmatpush.msra.mxu0 0.0
        %1058 = vmatpush.msra.mxu0 0.0
        %1059 = vmatpush.msra.mxu0 0.0
        %1060 = vmatpush.msra.mxu0 0.0
        %1061 = vmatpush.msra.mxu0 0.0
        %1062 = vmatpush.msra.mxu0 0.0
        %1063 = vmatpush.msra.mxu0 0.0
        %1064 = vmatpush.msra.mxu0 0.0
        %1065 = vmatpush.msra.mxu0 0.0
        %1066 = vmatpush.msra.mxu0 0.0
        %1067 = vmatpush.msra.mxu0 0.0
        %1068 = vmatpush.msra.mxu0 0.0
        %1069 = vmatpush.msra.mxu0 0.0
        %1070 = vmatpush.msra.mxu0 0.0
        %1071 = vmatpush.msra.mxu0 %v909
        %1072 = vmatpush.msra.mxu0 %v907
        %1073 = vmatmul.f32.gmra.mxu0 %v1055
        %v1074 = vpop.f32.mrf.mxu0
        %v1075 = vadd.f32 0.0, %v1074
        %1076 = vdwg.mxu0
        %v1077 = vrcp.pop %v1027
        %v1078 = vmul.f32 %v1027, %v1077
        %v1079 = vsub.f32 1.0, %v1078
        %v1080 = vmul.f32 %v1077, %v1079
        %v1081 = vadd.f32 %v1077, %v1080
        %vm1082 = vweird.f32 %v1027
        %vm1083 = vweird.f32 %v1077
        %vm1084 = vmor %vm1082, %vm1083
        %v1085 = vsel %vm1084, %v1077, %v1081
        %v1086 = vand.u32 2147483647, %v1027
        %vm1087 = vcmp.eq.f32.partialorder %v1086, 8.507059e+37
        %v1088 = vand.u32 %v1027, 2147483648
        %v1089 = vor.u32 1.1754944e-38, %v1088
        %v1090 = vsel %vm1087, %v1089, %v1085
        %v1091 = vmul.f32 %v1052, %v1090
        %v1092 = vrcp.pop %v1030
        %v1093 = vmul.f32 %v1030, %v1092
        %v1094 = vsub.f32 1.0, %v1093
        %v1095 = vmul.f32 %v1092, %v1094
        %v1096 = vadd.f32 %v1092, %v1095
        %vm1097 = vweird.f32 %v1030
        %vm1098 = vweird.f32 %v1092
        %vm1099 = vmor %vm1097, %vm1098
        %v1100 = vsel %vm1099, %v1092, %v1096
        %v1101 = vand.u32 2147483647, %v1030
        %vm1102 = vcmp.eq.f32.partialorder %v1101, 8.507059e+37
        %v1103 = vand.u32 %v1030, 2147483648
        %v1104 = vor.u32 1.1754944e-38, %v1103
        %v1105 = vsel %vm1102, %v1104, %v1100
        %v1106 = vmul.f32 %v1075, %v1105
        %1109 = vrot.lane.b32.xlu0 %v779, 8
        %v1110 = vpop.permute.xlu0 %1109
        %1111 = vrot.lane.b32.xlu0 %v794, 8
        %v1112 = vpop.permute.xlu0 %1111
        %1117 = vrot.lane.b32.xlu0 %v949, 16
        %v1118 = vpop.permute.xlu0 %1117
        %1119 = vrot.lane.b32.xlu0 %v964, 16
        %v1120 = vpop.permute.xlu0 %1119
        %1125 = vrot.lane.b32.xlu0 %v1091, 24
        %v1126 = vpop.permute.xlu0 %1125
        %1127 = vrot.lane.b32.xlu0 %v1106, 24
        %v1128 = vpop.permute.xlu0 %1127
        %v1131 = vsel %vm487, %v637, %v1110
        %v1132 = vsel %vm487, %v652, %v1112
        %v1133 = vsel %vm546, %v1131, %v1118
        %v1134 = vsel %vm546, %v1132, %v1120
        %vm1135 = vcmask 195584
        %v1136 = vsel %vm1135, %v1133, %v1126
        %v1137 = vsel %vm1135, %v1134, %v1128
        %v1139 = vperm.slane %v402, 0
        %v1142 = vsel %vm412, %v1136, 0
        %v1145 = vsel %vm412, %v1137, 0
        %1147 = vmatpush.msra.mxu0 0.0
        %1148 = vmatpush.msra.mxu0 0.0
        %1149 = vmatpush.msra.mxu0 0.0
        %1150 = vmatpush.msra.mxu0 0.0
        %1151 = vmatpush.msra.mxu0 0.0
        %1152 = vmatpush.msra.mxu0 0.0
        %1153 = vmatpush.msra.mxu0 0.0
        %1154 = vmatpush.msra.mxu0 0.0
        %1155 = vmatpush.msra.mxu0 0.0
        %1156 = vmatpush.msra.mxu0 0.0
        %1157 = vmatpush.msra.mxu0 0.0
        %1158 = vmatpush.msra.mxu0 0.0
        %1159 = vmatpush.msra.mxu0 %v399
        %1160 = vmatpush.msra.mxu0 %v398
        %1161 = vmatpush.msra.mxu0 %v397
        %1162 = vmatpush.msra.mxu0 %v396
        %1163 = vmatmul.f32.gmra.mxu0 %v1142
        %v1164 = vpop.f32.mrf.mxu0
        %v1165 = vadd.f32 %v1139, %v1164
        %1166 = vmatmul.f32.gmra.mxu0 %v1145
        %v1167 = vpop.f32.mrf.mxu0
        %v1168 = vadd.f32 %v1139, %v1167
        %1169 = vdwg.mxu0
        %1170 = vst.msk [vmem:[%s376] sm:$0xff] %vm412, %v1165
        %1171 = vst.msk [vmem:[%s376 + $0x8] sm:$0xff] %vm412, %v1168
        %s1172 = sand.u32 %s212, 1
        %s1173 = scalar_lea.sflag [#allocation4], %s1172
        %s1174 = sand.u32 %s212, 1
        %s1175 = smul.addr %s1174, 16
        %s1176 = scalar_lea.vmem [#allocation8], %s1175
        // Predicated region
        $region65: #{tpu_custom_call.1} parent=51 // pred_check
          %p1177 = pneg %p222
        $region66: #{tpu_custom_call.1} parent=51 // pred_check_branch
          %1179 = sbr.rel (%p1177) target = $region68
        $region67: #{tpu_custom_call.1} parent=51 // pred_region
          %s1180 = smul.u32 2, %s26
          %1182 = vsyncadd %s1173, 0
          %s1183 = smul.addr %s1180, 8
          %s1184 = scalar_lea.hbm %s8, %s1183
          %s1185 = sshll.u32 %s1176, 4
          %s1186 = int_to_ptr.vmem [resolvable:$true] %s1185
          %s1187 = sshll.u32 %s1184, 4
          %s1188 = int_to_ptr.hbm [resolvable:$true] %s1187
          %1193 = dma.vmem_to_hbm [thread:$0]  %s1186, 256, %s1188, %s1173, 128, 128, 8
        $region68: #{tpu_custom_call.1} parent=51 // pred_fallthru
          _
      $region52: #{tpu_custom_call.1} parent=5 // pred_fallthru
        _
      %p1194 = scmp.le.s32.totalorder 2, %s21
      // Predicated region
      $region69: #{tpu_custom_call.1} parent=5 // pred_check
        %p1195 = pneg %p1194
      $region70: #{tpu_custom_call.1} parent=5 // pred_check_branch
        %1197 = sbr.rel (%p1195) target = $region72
      $region71: #{tpu_custom_call.1} parent=5 // pred_region
        %s1198 = ssub.s32 %s21, 2
        // Predicated region
        $region73: #{tpu_custom_call.1} parent=71 // pred_check
          %p1199 = pneg %p228
        $region74: #{tpu_custom_call.1} parent=71 // pred_check_branch
          %1201 = sbr.rel (%p1199) target = $region76
        $region75: #{tpu_custom_call.1} parent=71 // pred_region
          %s1202 = sand.u32 %s213, 1
          %s1203 = scalar_lea.sflag [#allocation4], %s1202
          %s1204 = sand.u32 %s213, 1
          %s1205 = smul.addr %s1204, 16
          %s1206 = scalar_lea.vmem [#allocation8], %s1205
          %1208 = dma.done %s1203, 256
        $region76: #{tpu_custom_call.1} parent=71 // pred_fallthru
          _
      $region72: #{tpu_custom_call.1} parent=5 // pred_fallthru
        _
    $region6: #{tpu_custom_call.1} parent=1 // loop_footer
      %s25 = sadd.s32 1, %s21
    $region7: #{tpu_custom_call.1} parent=1 // loop_footer_branch
      %20 = sbr.rel target = $region3
    $region8: #{tpu_custom_call.1} parent=1 // loop_exit
      _
    %1209 = vsyncpa [#allocation3], 1
    %s1210 = scalar_lea.sflag [#allocation3], 1
    %1211 = vsyncpa %s1210, 1
    %1212 = vsyncpa [#allocation6], 1
    %1213 = vsyncpa [#allocation4], 1
    %s1214 = scalar_lea.sflag [#allocation4], 1
    %1215 = vsyncpa %s1214, 1

</llo_original>
